<compile_context>
chip_gen: v7x
topology: tpu7x:2x2x1
jax: 0.10.0
libtpu: 0.0.40
codegen_flags: <defaults>
</compile_context>

<pallas_src>
import jax
import jax.numpy as jnp
from jax.experimental import pallas as pl
from jax.experimental.pallas import tpu as pltpu

_MiB = 1024 * 1024
_MAX_LANES = 32768  # widest lane-dense row considered


def _copy_kernel(x_ref, o_ref):
    # Pure pass-through: copy the current VMEM tile.
    o_ref[...] = x_ref[...]


def _sublane_multiple(dtype) -> int:
    # Native VMEM tile is (32 // itemsize, 128):
    # 8 sublanes for f32, 16 for bf16, 32 for int8/fp8.
    itemsize = jnp.dtype(dtype).itemsize
    return max(8, 32 // max(1, itemsize))


def _vmem_capacity_bytes() -> int:
    try:
        return int(pltpu.get_tpu_info().vmem_capacity_bytes)
    except Exception:
        # Conservative fallback: v7x per-TensorCore VMEM (smallest of the
        # supported generations) — sizes derived from this work everywhere.
        return 64 * _MiB


def _block_budget_bytes(vmem_bytes: int) -> int:
    # Input and output tiles are each double-buffered -> ~4x block bytes live
    # in VMEM at once, plus internal scratch.  Gives 16 MiB on 128-MiB parts
    # (v5e/v6e) and 12 MiB on v7x (64 MiB).
    return max(1 * _MiB, min(16 * _MiB, (vmem_bytes - 16 * _MiB) // 4))


def _lane_dense_layout(n_elems: int, sub: int):
    """Largest lanes (multiple of 128, <= _MAX_LANES) dividing n_elems.

    Prefers factorizations with rows >= the dtype sublane multiple; returns
    None if n_elems is not a multiple of 128.
    """
    best_any = None
    for lanes in range(_MAX_LANES, 0, -128):
        if lanes > n_elems or n_elems % lanes != 0:
            continue
        rows = n_elems // lanes
        if rows >= sub:
            return rows, lanes          # largest lanes with sublane-full rows
        if best_any is None:
            best_any = (rows, lanes)    # largest lanes overall (rows < sub)
    return best_any


def _tiled_copy(x2: jax.Array, *, donate_input: bool = False) -> jax.Array:
    """Tiled, pipelined, lane-dense identity copy of a 2-D slab."""
    rows, lanes = x2.shape
    itemsize = jnp.dtype(x2.dtype).itemsize
    sub = _sublane_multiple(x2.dtype)

    vmem_cap = _vmem_capacity_bytes()
    budget = _block_budget_bytes(vmem_cap)

    # Block rows: as large as the per-buffer budget allows, dtype-aware
    # sublane-multiple rounding.
    block_rows = budget // (lanes * itemsize)
    block_rows = max(sub, (block_rows // sub) * sub)

    if block_rows >= rows:
        if rows >= 2 * sub:
            # Split into >= 2 blocks so the "parallel" grid axis can shard
            # across v7x's two TensorCores (neutral on single-TC v5e/v6e).
            half = -(-rows // 2)
            block_rows = ((half + sub - 1) // sub) * sub
        else:
            block_rows = rows  # tiny slab: single full-extent block (legal)

    grid = (pl.cdiv(rows, block_rows),)

    block_bytes = block_rows * lanes * itemsize
    vmem_limit = int(min(4 * block_bytes + 8 * _MiB, vmem_cap - 4 * _MiB))

    nbytes = rows * lanes * itemsize
    cost = pl.CostEstimate(flops=0, transcendentals=0, bytes_accessed=2 * nbytes)

    extra = {}
    if donate_input:
        # Only alias when the caller actually donates x; otherwise XLA would
        # insert a defensive copy and double HBM traffic.
        extra["input_output_aliases"] = {0: 0}

    return pl.pallas_call(
        _copy_kernel,
        out_shape=jax.ShapeDtypeStruct((rows, lanes), x2.dtype),
        grid=grid,
        in_specs=[pl.BlockSpec((block_rows, lanes), lambda i: (i, 0))],
        out_specs=pl.BlockSpec((block_rows, lanes), lambda i: (i, 0)),
        compiler_params=pltpu.CompilerParams(
            dimension_semantics=("parallel",),
            vmem_limit_bytes=vmem_limit,
        ),
        cost_estimate=cost,
        **extra,
    )(x2)


def identity(x: jax.Array, *, materialize: bool = True,
             donate_input: bool = False) -> jax.Array:
    """Identity forward pass.

    materialize=False: return x untouched (zero HBM traffic — the optimal
    implementation of nn.Identity).  materialize=True: tiled Pallas copy.
    donate_input=True additionally aliases the output onto the (donated)
    input buffer.
    """
    if not materialize:
        return x  # the fastest identity: no copy at all

    orig_shape = x.shape
    n = x.size
    if n == 0:
        return x

    sub = _sublane_multiple(x.dtype)
    layout = _lane_dense_layout(n, sub)
    if layout is not None:
        rows, lanes = layout
        out2 = _tiled_copy(x.reshape(rows, lanes), donate_input=donate_input)
        return out2.reshape(orig_shape)

    # Odd element count (not a multiple of 128): pad up to a lane-dense slab,
    # run the same tiled kernel, slice the valid prefix back out.
    padded = ((n + 1023) // 1024) * 1024
    rows, lanes = _lane_dense_layout(padded, sub)
    x_flat = jnp.pad(x.reshape(-1), (0, padded - n))
    out2 = _tiled_copy(x_flat.reshape(rows, lanes))
    return out2.reshape(-1)[:n].reshape(orig_shape)


if __name__ == "__main__":
    key = jax.random.PRNGKey(0)

    # Small NCHW input consistent with typical resnet usage: batch=2, C=4, H=W=16.
    x = jax.random.normal(key, (2, 4, 16, 16), dtype=jnp.float32)
    y = identity(x)                      # lane-dense tiled Pallas copy path
    jax.block_until_ready(y)
    assert y.shape == x.shape and y.dtype == x.dtype
    assert bool(jnp.all(y == x))

    # Packed-dtype path (bf16 -> 16-row sublane multiple).
    x_bf16 = jax.random.normal(key, (4, 8, 32, 32), dtype=jnp.float32).astype(jnp.bfloat16)
    y_bf16 = identity(x_bf16)
    jax.block_until_ready(y_bf16)
    assert y_bf16.dtype == jnp.bfloat16
    assert bool(jnp.all(y_bf16 == x_bf16))

    # Odd-sized fallback path (element count not a multiple of 128): pad + tile + slice.
    x_odd = jax.random.normal(key, (3, 5, 7), dtype=jnp.float32)
    y_odd = identity(x_odd)
    jax.block_until_ready(y_odd)
    assert y_odd.shape == x_odd.shape
    assert bool(jnp.all(y_odd == x_odd))

    # Zero-cost path (pure pass-through, no kernel).
    assert identity(x, materialize=False) is x

    print("KERNEL_OK")
</pallas_src>

<mosaic_0001>
module attributes {stable_mosaic.version = 11 : i64} {
  func.func @_copy_kernel(%arg0: i32, %arg1: memref<8x256xf32, #tpu.memory_space<vmem>>, %arg2: memref<8x256xf32, #tpu.memory_space<vmem>>) attributes {dimension_semantics = [#tpu.dimension_semantics<parallel>], iteration_bounds = array<i64: 1>, scalar_prefetch = 0 : i64, scratch_operands = 0 : i64, tpu.core_type = #tpu.core_type<tc>, window_params = [{transform_indices = @transform_0, window_bounds = array<i64: 8, 256>}, {transform_indices = @transform_1, window_bounds = array<i64: 8, 256>}]} {
    %c0 = arith.constant 0 : index
    %c0_0 = arith.constant 0 : index
    %0 = vector.load %arg1[%c0, %c0_0] : memref<8x256xf32, #tpu.memory_space<vmem>>, vector<8x256xf32>
    %c0_1 = arith.constant 0 : index
    %c0_2 = arith.constant 0 : index
    %1 = vector.load %arg2[%c0_1, %c0_2] : memref<8x256xf32, #tpu.memory_space<vmem>>, vector<8x256xf32>
    tpu.vector_store %arg2[%c0_1, %c0_2], %0 {strides = array<i32>} : memref<8x256xf32, #tpu.memory_space<vmem>>, vector<8x256xf32>,
    return
  }
  func.func @transform_0(%arg0: i32) -> (i32, i32) {
    %c0_i32 = arith.constant 0 : i32
    %c0_i32_0 = arith.constant 0 : i32
    return %arg0, %c0_i32 : i32, i32
  }
  func.func @transform_1(%arg0: i32) -> (i32, i32) {
    %c0_i32 = arith.constant 0 : i32
    %c0_i32_0 = arith.constant 0 : i32
    return %arg0, %c0_i32 : i32, i32
  }
}

</mosaic_0001>

<llo_original>
// kernel: tpu_custom_call.1
$region0: #{tpu_custom_call.1}
  #allocation0 [shape = 'u32[]', space=smem, size = 0x4, offset = 0x4, fixed_abs, tag = 'smem constant byte address 0x4 - core index']
  #allocation1 [shape = 'u32[144,128]{1,0:T(1,128)}', space=vmem, size = 0x12000, scoped, tag = 'internal scratch']
  %s0 = inlined_call_operand.hbm [shape: f32[8,256], index: 0, kind: input, shape index: {}]
  %s1 = inlined_call_operand.hbm [shape: f32[8,256], index: 1, kind: output, shape index: {}]
  %s2 = sld [smem:[#allocation0]]
  $region18: #{tpu_custom_call.1} parent=0
    _
  %s4 = ssub.s32 1, %s2
  %s5 = scalar_select 0, %s4, %s2
  $region1: #{tpu_custom_call.1} parent=0
    #allocation2 [shape = 'u8[8192]{0}', space=vmem, size = 0x2000, scoped, tag = 'input window, operand 0, single buffered']
    #allocation3 [shape = 's32[1]{0}', space=sflag, size = 0x4, scoped, tag = 'scoped memory for tpu_custom_call.1']
    #allocation4 [shape = 's32[1]{0}', space=sflag, size = 0x4, scoped, tag = 'scoped memory for tpu_custom_call.1']
    #allocation5 [shape = 'u8[8192]{0}', space=vmem, size = 0x2000, scoped, tag = 'output window, operand 0, single buffered']
    %6 = vsyncpa [#allocation3], 0
    %7 = vsyncpa [#allocation4], 0
    // Predicated region
    $region2: #{tpu_custom_call.1} parent=1 // pred_check
      _
    $region3: #{tpu_custom_call.1} parent=1 // pred_check_branch
      %9 = sbr.rel (0) target = $region5
    $region4: #{tpu_custom_call.1} parent=1 // pred_region
      %s11 = ssub.s32 256, 256
      %12 = vsyncadd [#allocation3], %s11
      %s14 = sshll.u32 [#allocation2], 4
      %s15 = int_to_ptr.vmem [resolvable:$true] %s14
      %17 = dma.hbm_to_vmem [thread:$0]  %s0, 256, %s15, [#allocation3]
    $region5: #{tpu_custom_call.1} parent=1 // pred_fallthru
      _
    // Predicated region
    $region6: #{tpu_custom_call.1} parent=1 // pred_check
      _
    $region7: #{tpu_custom_call.1} parent=1 // pred_check_branch
      %19 = sbr.rel (0) target = $region9
    $region8: #{tpu_custom_call.1} parent=1 // pred_region
      %20 = dma.done [#allocation3], 256
    $region9: #{tpu_custom_call.1} parent=1 // pred_fallthru
      _
    %v21 = vld [vmem:[#allocation2] sm:$0xff]
    %v22 = vld [vmem:[#allocation2 + $0x8] sm:$0xff]
    %23 = vst [vmem:[#allocation5] sm:$0xff] %v21
    %24 = vst [vmem:[#allocation5 + $0x8] sm:$0xff] %v22
    // Predicated region
    $region10: #{tpu_custom_call.1} parent=1 // pred_check
      _
    $region11: #{tpu_custom_call.1} parent=1 // pred_check_branch
      %26 = sbr.rel (0) target = $region13
    $region12: #{tpu_custom_call.1} parent=1 // pred_region
      %s28 = ssub.s32 256, 256
      %29 = vsyncadd [#allocation4], %s28
      %s31 = sshll.u32 [#allocation5], 4
      %s32 = int_to_ptr.vmem [resolvable:$true] %s31
      %34 = dma.vmem_to_hbm [thread:$0]  %s32, 256, %s1, [#allocation4]
    $region13: #{tpu_custom_call.1} parent=1 // pred_fallthru
      _
    // Predicated region
    $region14: #{tpu_custom_call.1} parent=1 // pred_check
      _
    $region15: #{tpu_custom_call.1} parent=1 // pred_check_branch
      %36 = sbr.rel (0) target = $region17
    $region16: #{tpu_custom_call.1} parent=1 // pred_region
      %37 = dma.done [#allocation4], 256
    $region17: #{tpu_custom_call.1} parent=1 // pred_fallthru
      _
    %38 = vsyncpa [#allocation3], 1
    %39 = vsyncpa [#allocation4], 1

</llo_original>
